<compile_context>
chip_gen: v5e
topology: v5e:2x2
jax: 0.10.0
libtpu: 0.0.40
codegen_flags: <defaults>
</compile_context>

<pallas_src>
import functools

import jax
import jax.numpy as jnp
from jax.experimental import pallas as pl
from jax.experimental.pallas import tpu as pltpu

UNITS = (256, 256)           # hidden sizes from `units = [256, 256]`
IN_DIM = 4                   # cartpole observation dim (policy_in_type size)
FEATURE_SIZE = 32            # inv_encoder_out_type size (module feature_size)
BATCH = 8


def _round_up(n, m):
    return ((n + m - 1) // m) * m


def _emlp_kernel(x_ref, w1_ref, b1_ref, w2_ref, b2_ref, w3_ref, b3_ref, o_ref):
    x = x_ref[...]                                   # (TB, IN_DIM) f32
    w1 = w1_ref[...]                                 # (IN_DIM, 256) f32
    tb = x.shape[0]
    n1 = w1.shape[1]

    # Layer 1 on the VPU: K=4 broadcast FMAs (avoids an MXU pipeline fill for
    # a tiny contraction).  Broadcasts hoisted out of the accumulation chain.
    xb = [jnp.broadcast_to(x[:, k:k + 1], (tb, n1)) for k in range(IN_DIM)]
    wb = [jnp.broadcast_to(w1[k:k + 1, :], (tb, n1)) for k in range(IN_DIM)]
    h1 = jnp.broadcast_to(b1_ref[...], (tb, n1))
    for k in range(IN_DIM):
        h1 = h1 + xb[k] * wb[k]
    h1 = jnp.maximum(h1, 0.0)                        # (TB, 256) f32

    # Layer 2: bf16 x bf16 on the MXU with f32 accumulation; bias/ReLU in f32.
    h2 = jnp.dot(h1.astype(jnp.bfloat16), w2_ref[...],
                 preferred_element_type=jnp.float32)
    h2 = jnp.maximum(h2 + b2_ref[...], 0.0)          # (TB, 256) f32

    # Output layer (no activation; EMLP output layer is a plain equivariant
    # linear and forward returns .tensor).  Stored as (TB, 32) f32 directly.
    out = jnp.dot(h2.astype(jnp.bfloat16), w3_ref[...],
                  preferred_element_type=jnp.float32)
    o_ref[...] = (out + b3_ref[...]).astype(o_ref.dtype)


def prepare_params(params):
    """One-time packing of weights for the kernel.

    Casts the two MXU-layer weights to bf16 and keeps biases as 2-D f32 rows.
    Call once; pass the result to `cartpole_inv_encoder` every step so no
    weight-prep ops run in the hot path.
    """
    w1, b1, w2, b2, w3, b3 = params
    row = lambda b: jnp.asarray(b, jnp.float32).reshape(1, -1)
    return (jnp.asarray(w1, jnp.float32), row(b1),
            jnp.asarray(w2, jnp.bfloat16), row(b2),
            jnp.asarray(w3, jnp.bfloat16), row(b3))


@functools.partial(jax.jit, static_argnames=("block_batch",))
def cartpole_inv_encoder(x, packed_params, *, block_batch=1024):
    """x: (B, IN_DIM) float32.  Returns (B, FEATURE_SIZE) float32."""
    w1, b1, w2_bf, b2, w3_bf, b3 = packed_params
    B = x.shape[0]

    # Batch tile: multiple of the f32 sublane tile (8); capped at ceil(B/2)
    # so the parallel batch axis has >= 2 grid steps whenever B allows (lets
    # v7x use both TensorCores).  Weights use constant index_maps so their
    # DMA is paid once and the buffers stay VMEM-resident across grid steps.
    b8 = _round_up(max(B, 1), 8)
    tb = min(_round_up(block_batch, 8), _round_up(pl.cdiv(b8, 2), 8))
    tb = max(tb, 8)
    b_pad = _round_up(B, tb)
    x_pad = jnp.pad(x, ((0, b_pad - B), (0, 0))) if b_pad != B else x
    grid = (b_pad // tb,)

    # Advisory cost estimate so XLA can schedule/overlap the custom call.
    flops = 2 * b_pad * (IN_DIM * UNITS[0] + UNITS[0] * UNITS[1]
                         + UNITS[1] * FEATURE_SIZE)
    bytes_accessed = (
        w1.size * 4 + b1.size * 4 + w2_bf.size * 2 + b2.size * 4
        + w3_bf.size * 2 + b3.size * 4
        + b_pad * (IN_DIM * 4 + FEATURE_SIZE * 4))

    out = pl.pallas_call(
        _emlp_kernel,
        out_shape=jax.ShapeDtypeStruct((b_pad, FEATURE_SIZE), jnp.float32),
        grid_spec=pltpu.PrefetchScalarGridSpec(
            num_scalar_prefetch=0,
            grid=grid,
            in_specs=[
                pl.BlockSpec((tb, IN_DIM), lambda i: (i, 0)),               # x tile
                pl.BlockSpec((IN_DIM, UNITS[0]), lambda i: (0, 0)),         # w1 f32
                pl.BlockSpec((1, UNITS[0]), lambda i: (0, 0)),              # b1
                pl.BlockSpec((UNITS[0], UNITS[1]), lambda i: (0, 0)),       # w2 bf16
                pl.BlockSpec((1, UNITS[1]), lambda i: (0, 0)),              # b2
                pl.BlockSpec((UNITS[1], FEATURE_SIZE), lambda i: (0, 0)),   # w3 bf16
                pl.BlockSpec((1, FEATURE_SIZE), lambda i: (0, 0)),          # b3
            ],
            out_specs=pl.BlockSpec((tb, FEATURE_SIZE), lambda i: (i, 0)),
        ),
        compiler_params=pltpu.CompilerParams(
            # Batch axis is embarrassingly parallel -> v7x shards it over both
            # TensorCores; harmless on single-TC v5e/v6e.
            dimension_semantics=("parallel",),
        ),
        cost_estimate=pl.CostEstimate(
            flops=flops, transcendentals=0, bytes_accessed=bytes_accessed),
    )(x_pad, w1, b1, w2_bf, b2, w3_bf, b3)

    # Padded rows (from batch round-up) are sliced away here; do not consume
    # the padded buffer directly.
    return out[:B] if b_pad != B else out


def init_params(key):
    """Deterministic synthetic init (He-style scaling), weights as (in, out)."""
    ks = jax.random.split(key, 6)

    def linear(kw, d_in, d_out):
        w = jax.random.normal(kw, (d_in, d_out), jnp.float32) * (2.0 / d_in) ** 0.5
        b = jnp.zeros((1, d_out), jnp.float32)
        return w, b

    w1, b1 = linear(ks[0], IN_DIM, UNITS[0])
    w2, b2 = linear(ks[1], UNITS[0], UNITS[1])
    w3, b3 = linear(ks[2], UNITS[1], FEATURE_SIZE)
    return (w1, b1, w2, b2, w3, b3)


def reference_forward(x, params):
    """Pure-JAX reference applying the same bf16 weight/activation quantization
    as the kernel (f32 accumulation), for a tight numerical comparison."""
    w1, b1, w2, b2, w3, b3 = params
    q = lambda a: a.astype(jnp.bfloat16).astype(jnp.float32)
    h1 = jnp.maximum(x @ w1 + b1, 0.0)
    h2 = jnp.maximum(q(h1) @ q(w2) + b2, 0.0)
    return q(h2) @ q(w3) + b3


if __name__ == "__main__":
    key = jax.random.PRNGKey(0)
    k_x, k_p = jax.random.split(key)
    params = init_params(k_p)
    packed = prepare_params(params)   # one-time weight packing (bf16 etc.)

    # Small demo batch (single tile, grid=(1,)).
    x = jax.random.normal(k_x, (BATCH, IN_DIM), jnp.float32)
    out = jax.block_until_ready(cartpole_inv_encoder(x, packed))
    ref = reference_forward(x, params)
    assert out.shape == (BATCH, FEATURE_SIZE), out.shape
    assert jnp.allclose(out, ref, atol=1e-3, rtol=1e-3), float(
        jnp.max(jnp.abs(out - ref)))

    # Ragged multi-tile path: B=20, tile=8 -> padded to 24, grid=(3,).
    x2 = jax.random.normal(k_x, (20, IN_DIM), jnp.float32)
    out2 = jax.block_until_ready(cartpole_inv_encoder(x2, packed, block_batch=8))
    ref2 = reference_forward(x2, params)
    assert out2.shape == (20, FEATURE_SIZE), out2.shape
    assert jnp.allclose(out2, ref2, atol=1e-3, rtol=1e-3), float(
        jnp.max(jnp.abs(out2 - ref2)))

    # Moderate batch, default tile policy -> exactly 2 grid steps (dual-TC
    # path on v7x, harmless elsewhere).
    x3 = jax.random.normal(k_x, (300, IN_DIM), jnp.float32)
    out3 = jax.block_until_ready(cartpole_inv_encoder(x3, packed))
    ref3 = reference_forward(x3, params)
    assert out3.shape == (300, FEATURE_SIZE), out3.shape
    assert jnp.allclose(out3, ref3, atol=1e-3, rtol=1e-3), float(
        jnp.max(jnp.abs(out3 - ref3)))

    print("KERNEL_OK")
</pallas_src>

<mosaic_0001>
module attributes {stable_mosaic.version = 11 : i64} {
  func.func @_emlp_kernel(%arg0: i32, %arg1: memref<8x4xf32, #tpu.memory_space<vmem>>, %arg2: memref<4x256xf32, #tpu.memory_space<vmem>>, %arg3: memref<1x256xf32, #tpu.memory_space<vmem>>, %arg4: memref<256x256xbf16, #tpu.memory_space<vmem>>, %arg5: memref<1x256xf32, #tpu.memory_space<vmem>>, %arg6: memref<256x32xbf16, #tpu.memory_space<vmem>>, %arg7: memref<1x32xf32, #tpu.memory_space<vmem>>, %arg8: memref<8x32xf32, #tpu.memory_space<vmem>>) attributes {dimension_semantics = [#tpu.dimension_semantics<parallel>], iteration_bounds = array<i64: 1>, scalar_prefetch = 0 : i64, scratch_operands = 0 : i64, tpu.core_type = #tpu.core_type<tc>, window_params = [{transform_indices = @transform_0, window_bounds = array<i64: 8, 4>}, {pipeline_mode = #tpu.pipeline_mode<synchronous>, transform_indices = @transform_1, window_bounds = array<i64: 4, 256>}, {pipeline_mode = #tpu.pipeline_mode<synchronous>, transform_indices = @transform_2, window_bounds = array<i64: 1, 256>}, {pipeline_mode = #tpu.pipeline_mode<synchronous>, transform_indices = @transform_3, window_bounds = array<i64: 256, 256>}, {pipeline_mode = #tpu.pipeline_mode<synchronous>, transform_indices = @transform_4, window_bounds = array<i64: 1, 256>}, {pipeline_mode = #tpu.pipeline_mode<synchronous>, transform_indices = @transform_5, window_bounds = array<i64: 256, 32>}, {pipeline_mode = #tpu.pipeline_mode<synchronous>, transform_indices = @transform_6, window_bounds = array<i64: 1, 32>}, {transform_indices = @transform_7, window_bounds = array<i64: 8, 32>}]} {
    %c0 = arith.constant 0 : index
    %c0_0 = arith.constant 0 : index
    %0 = vector.load %arg1[%c0, %c0_0] : memref<8x4xf32, #tpu.memory_space<vmem>>, vector<8x4xf32>
    %c0_1 = arith.constant 0 : index
    %c0_2 = arith.constant 0 : index
    %1 = vector.load %arg2[%c0_1, %c0_2] : memref<4x256xf32, #tpu.memory_space<vmem>>, vector<4x256xf32>
    %2 = vector.extract_strided_slice %0 {offsets = [0, 0], sizes = [8, 1], strides = [1, 1]} : vector<8x4xf32> to vector<8x1xf32>
    %3 = vector.shape_cast %2 : vector<8x1xf32> to vector<8x1xf32>
    %4 = vector.broadcast %3 : vector<8x1xf32> to vector<8x256xf32>
    %5 = vector.extract_strided_slice %0 {offsets = [0, 1], sizes = [8, 1], strides = [1, 1]} : vector<8x4xf32> to vector<8x1xf32>
    %6 = vector.shape_cast %5 : vector<8x1xf32> to vector<8x1xf32>
    %7 = vector.broadcast %6 : vector<8x1xf32> to vector<8x256xf32>
    %8 = vector.extract_strided_slice %0 {offsets = [0, 2], sizes = [8, 1], strides = [1, 1]} : vector<8x4xf32> to vector<8x1xf32>
    %9 = vector.shape_cast %8 : vector<8x1xf32> to vector<8x1xf32>
    %10 = vector.broadcast %9 : vector<8x1xf32> to vector<8x256xf32>
    %11 = vector.extract_strided_slice %0 {offsets = [0, 3], sizes = [8, 1], strides = [1, 1]} : vector<8x4xf32> to vector<8x1xf32>
    %12 = vector.shape_cast %11 : vector<8x1xf32> to vector<8x1xf32>
    %13 = vector.broadcast %12 : vector<8x1xf32> to vector<8x256xf32>
    %14 = vector.extract_strided_slice %1 {offsets = [0, 0], sizes = [1, 256], strides = [1, 1]} : vector<4x256xf32> to vector<1x256xf32>
    %15 = vector.shape_cast %14 : vector<1x256xf32> to vector<1x256xf32>
    %16 = vector.broadcast %15 : vector<1x256xf32> to vector<8x256xf32>
    %17 = vector.extract_strided_slice %1 {offsets = [1, 0], sizes = [1, 256], strides = [1, 1]} : vector<4x256xf32> to vector<1x256xf32>
    %18 = vector.shape_cast %17 : vector<1x256xf32> to vector<1x256xf32>
    %19 = vector.broadcast %18 : vector<1x256xf32> to vector<8x256xf32>
    %20 = vector.extract_strided_slice %1 {offsets = [2, 0], sizes = [1, 256], strides = [1, 1]} : vector<4x256xf32> to vector<1x256xf32>
    %21 = vector.shape_cast %20 : vector<1x256xf32> to vector<1x256xf32>
    %22 = vector.broadcast %21 : vector<1x256xf32> to vector<8x256xf32>
    %23 = vector.extract_strided_slice %1 {offsets = [3, 0], sizes = [1, 256], strides = [1, 1]} : vector<4x256xf32> to vector<1x256xf32>
    %24 = vector.shape_cast %23 : vector<1x256xf32> to vector<1x256xf32>
    %25 = vector.broadcast %24 : vector<1x256xf32> to vector<8x256xf32>
    %c0_3 = arith.constant 0 : index
    %c0_4 = arith.constant 0 : index
    %26 = vector.load %arg3[%c0_3, %c0_4] : memref<1x256xf32, #tpu.memory_space<vmem>>, vector<1x256xf32>
    %27 = vector.shape_cast %26 : vector<1x256xf32> to vector<1x256xf32>
    %28 = vector.broadcast %27 : vector<1x256xf32> to vector<8x256xf32>
    %29 = arith.mulf %4, %16 : vector<8x256xf32>
    %30 = arith.addf %28, %29 : vector<8x256xf32>
    %31 = arith.mulf %7, %19 : vector<8x256xf32>
    %32 = arith.addf %30, %31 : vector<8x256xf32>
    %33 = arith.mulf %10, %22 : vector<8x256xf32>
    %34 = arith.addf %32, %33 : vector<8x256xf32>
    %35 = arith.mulf %13, %25 : vector<8x256xf32>
    %36 = arith.addf %34, %35 : vector<8x256xf32>
    %cst = arith.constant 0.000000e+00 : f32
    %37 = vector.broadcast %cst : f32 to vector<8x256xf32>
    %38 = arith.maximumf %36, %37 : vector<8x256xf32>
    %39 = arith.truncf %38 : vector<8x256xf32> to vector<8x256xbf16>
    %c0_5 = arith.constant 0 : index
    %c0_6 = arith.constant 0 : index
    %40 = vector.load %arg4[%c0_5, %c0_6] : memref<256x256xbf16, #tpu.memory_space<vmem>>, vector<256x256xbf16>
    %cst_7 = arith.constant dense<0.000000e+00> : vector<8x256xf32>
    %41 = tpu.matmul %39, %40, %cst_7 {dimension_numbers = #tpu.dot_dimension_numbers<[1], [0], [0], [1], [0, 0, 1, 1], [], []>} : vector<8x256xbf16>, vector<256x256xbf16>, vector<8x256xf32> -> vector<8x256xf32>
    %c0_8 = arith.constant 0 : index
    %c0_9 = arith.constant 0 : index
    %42 = vector.load %arg5[%c0_8, %c0_9] : memref<1x256xf32, #tpu.memory_space<vmem>>, vector<1x256xf32>
    %43 = vector.broadcast %42 : vector<1x256xf32> to vector<8x256xf32>
    %44 = arith.addf %41, %43 : vector<8x256xf32>
    %cst_10 = arith.constant 0.000000e+00 : f32
    %45 = vector.broadcast %cst_10 : f32 to vector<8x256xf32>
    %46 = arith.maximumf %44, %45 : vector<8x256xf32>
    %47 = arith.truncf %46 : vector<8x256xf32> to vector<8x256xbf16>
    %c0_11 = arith.constant 0 : index
    %c0_12 = arith.constant 0 : index
    %48 = vector.load %arg6[%c0_11, %c0_12] : memref<256x32xbf16, #tpu.memory_space<vmem>>, vector<256x32xbf16>
    %cst_13 = arith.constant dense<0.000000e+00> : vector<8x32xf32>
    %49 = tpu.matmul %47, %48, %cst_13 {dimension_numbers = #tpu.dot_dimension_numbers<[1], [0], [0], [1], [0, 0, 1, 1], [], []>} : vector<8x256xbf16>, vector<256x32xbf16>, vector<8x32xf32> -> vector<8x32xf32>
    %c0_14 = arith.constant 0 : index
    %c0_15 = arith.constant 0 : index
    %50 = vector.load %arg7[%c0_14, %c0_15] : memref<1x32xf32, #tpu.memory_space<vmem>>, vector<1x32xf32>
    %51 = vector.broadcast %50 : vector<1x32xf32> to vector<8x32xf32>
    %52 = arith.addf %49, %51 : vector<8x32xf32>
    %c0_16 = arith.constant 0 : index
    %c0_17 = arith.constant 0 : index
    %53 = vector.load %arg8[%c0_16, %c0_17] : memref<8x32xf32, #tpu.memory_space<vmem>>, vector<8x32xf32>
    tpu.vector_store %arg8[%c0_16, %c0_17], %52 {strides = array<i32>} : memref<8x32xf32, #tpu.memory_space<vmem>>, vector<8x32xf32>,
    return
  }
  func.func @transform_0(%arg0: i32) -> (i32, i32) {
    %c0_i32 = arith.constant 0 : i32
    %c0_i32_0 = arith.constant 0 : i32
    return %arg0, %c0_i32 : i32, i32
  }
  func.func @transform_1(%arg0: i32) -> (i32, i32) {
    %c0_i32 = arith.constant 0 : i32
    %c0_i32_0 = arith.constant 0 : i32
    %c0_i32_1 = arith.constant 0 : i32
    return %c0_i32, %c0_i32_0 : i32, i32
  }
  func.func @transform_2(%arg0: i32) -> (i32, i32) {
    %c0_i32 = arith.constant 0 : i32
    %c0_i32_0 = arith.constant 0 : i32
    %c0_i32_1 = arith.constant 0 : i32
    return %c0_i32, %c0_i32_0 : i32, i32
  }
  func.func @transform_3(%arg0: i32) -> (i32, i32) {
    %c0_i32 = arith.constant 0 : i32
    %c0_i32_0 = arith.constant 0 : i32
    %c0_i32_1 = arith.constant 0 : i32
    return %c0_i32, %c0_i32_0 : i32, i32
  }
  func.func @transform_4(%arg0: i32) -> (i32, i32) {
    %c0_i32 = arith.constant 0 : i32
    %c0_i32_0 = arith.constant 0 : i32
    %c0_i32_1 = arith.constant 0 : i32
    return %c0_i32, %c0_i32_0 : i32, i32
  }
  func.func @transform_5(%arg0: i32) -> (i32, i32) {
    %c0_i32 = arith.constant 0 : i32
    %c0_i32_0 = arith.constant 0 : i32
    %c0_i32_1 = arith.constant 0 : i32
    return %c0_i32, %c0_i32_0 : i32, i32
  }
  func.func @transform_6(%arg0: i32) -> (i32, i32) {
    %c0_i32 = arith.constant 0 : i32
    %c0_i32_0 = arith.constant 0 : i32
    %c0_i32_1 = arith.constant 0 : i32
    return %c0_i32, %c0_i32_0 : i32, i32
  }
  func.func @transform_7(%arg0: i32) -> (i32, i32) {
    %c0_i32 = arith.constant 0 : i32
    %c0_i32_0 = arith.constant 0 : i32
    return %arg0, %c0_i32 : i32, i32
  }
}

</mosaic_0001>

<llo_original>
// kernel: cartpole_inv_encoder.1
$region0: #{cartpole_inv_encoder.1}
  #allocation0 [shape = 'u32[]', space=smem, size = 0x4, offset = 0x4, fixed_abs, tag = 'smem constant byte address 0x4 - core index']
  #allocation1 [shape = 'u32[72,128]{1,0:T(1,128)}', space=vmem, size = 0x9000, scoped, tag = 'internal scratch']
  %s0 = inlined_call_operand.vmem [shape: f32[8,4], index: 0, kind: input, shape index: {}]
  %s1 = inlined_call_operand.vmem [shape: f32[4,256], index: 1, kind: input, shape index: {}]
  %s2 = inlined_call_operand.vmem [shape: f32[1,256], index: 2, kind: input, shape index: {}]
  %s3 = inlined_call_operand.hbm [shape: bf16[256,256], index: 3, kind: input, shape index: {}]
  %s4 = inlined_call_operand.vmem [shape: f32[1,256], index: 4, kind: input, shape index: {}]
  %s5 = inlined_call_operand.vmem [shape: bf16[256,32], index: 5, kind: input, shape index: {}]
  %s6 = inlined_call_operand.vmem [shape: f32[1,32], index: 6, kind: input, shape index: {}]
  %s7 = inlined_call_operand.hbm [shape: f32[8,32], index: 7, kind: output, shape index: {}]
  %s8 = sld [smem:[#allocation0]]
  $region42: #{cartpole_inv_encoder.1} parent=0
    _
  %s10 = ssub.s32 1, %s8
  %s11 = scalar_select 0, %s10, %s8
  $region1: #{cartpole_inv_encoder.1} parent=0
    #allocation2 [shape = 'u8[131072]{0}', space=vmem, size = 0x20000, scoped, tag = 'input window, operand 3, single buffered']
    #allocation3 [shape = 's32[1]{0}', space=sflag, size = 0x4, scoped, tag = 'scoped memory for cartpole_inv_encoder.1']
    #allocation4 [shape = 's32[1]{0}', space=sflag, size = 0x4, scoped, tag = 'scoped memory for cartpole_inv_encoder.1']
    #allocation5 [shape = 'u8[4096]{0}', space=vmem, size = 0x1000, scoped, tag = 'output window, operand 0, single buffered']
    %12 = vsyncpa [#allocation3], 0
    %13 = vsyncpa [#allocation4], 0
    // Predicated region
    $region2: #{cartpole_inv_encoder.1} parent=1 // pred_check
      _
    $region3: #{cartpole_inv_encoder.1} parent=1 // pred_check_branch
      %15 = sbr.rel (0) target = $region5
    $region4: #{cartpole_inv_encoder.1} parent=1 // pred_region
      _
    $region5: #{cartpole_inv_encoder.1} parent=1 // pred_fallthru
      _
    // Predicated region
    $region6: #{cartpole_inv_encoder.1} parent=1 // pred_check
      _
    $region7: #{cartpole_inv_encoder.1} parent=1 // pred_check_branch
      %17 = sbr.rel (0) target = $region9
    $region8: #{cartpole_inv_encoder.1} parent=1 // pred_region
      _
    $region9: #{cartpole_inv_encoder.1} parent=1 // pred_fallthru
      _
    // Predicated region
    $region10: #{cartpole_inv_encoder.1} parent=1 // pred_check
      _
    $region11: #{cartpole_inv_encoder.1} parent=1 // pred_check_branch
      %19 = sbr.rel (0) target = $region13
    $region12: #{cartpole_inv_encoder.1} parent=1 // pred_region
      _
    $region13: #{cartpole_inv_encoder.1} parent=1 // pred_fallthru
      _
    // Predicated region
    $region14: #{cartpole_inv_encoder.1} parent=1 // pred_check
      _
    $region15: #{cartpole_inv_encoder.1} parent=1 // pred_check_branch
      %21 = sbr.rel (0) target = $region17
    $region16: #{cartpole_inv_encoder.1} parent=1 // pred_region
      %23 = vsyncadd [#allocation3], 0
      %s24 = sshll.u32 %s3, 4
      %s25 = int_to_ptr.hbm [resolvable:$true] %s24
      %s26 = sshll.u32 [#allocation2], 4
      %s27 = int_to_ptr.vmem [resolvable:$true] %s26
      %32 = dma.hbm_to_vmem [thread:$0]  %s25, 4096, %s27, [#allocation3], 128, 128, 8
    $region17: #{cartpole_inv_encoder.1} parent=1 // pred_fallthru
      _
    // Predicated region
    $region18: #{cartpole_inv_encoder.1} parent=1 // pred_check
      _
    $region19: #{cartpole_inv_encoder.1} parent=1 // pred_check_branch
      %34 = sbr.rel (0) target = $region21
    $region20: #{cartpole_inv_encoder.1} parent=1 // pred_region
      _
    $region21: #{cartpole_inv_encoder.1} parent=1 // pred_fallthru
      _
    // Predicated region
    $region22: #{cartpole_inv_encoder.1} parent=1 // pred_check
      _
    $region23: #{cartpole_inv_encoder.1} parent=1 // pred_check_branch
      %36 = sbr.rel (0) target = $region25
    $region24: #{cartpole_inv_encoder.1} parent=1 // pred_region
      _
    $region25: #{cartpole_inv_encoder.1} parent=1 // pred_fallthru
      _
    // Predicated region
    $region26: #{cartpole_inv_encoder.1} parent=1 // pred_check
      _
    $region27: #{cartpole_inv_encoder.1} parent=1 // pred_check_branch
      %38 = sbr.rel (0) target = $region29
    $region28: #{cartpole_inv_encoder.1} parent=1 // pred_region
      _
    $region29: #{cartpole_inv_encoder.1} parent=1 // pred_fallthru
      _
    // Predicated region
    $region30: #{cartpole_inv_encoder.1} parent=1 // pred_check
      _
    $region31: #{cartpole_inv_encoder.1} parent=1 // pred_check_branch
      %40 = sbr.rel (0) target = $region33
    $region32: #{cartpole_inv_encoder.1} parent=1 // pred_region
      %42 = dma.done [#allocation3], 4096
    $region33: #{cartpole_inv_encoder.1} parent=1 // pred_fallthru
      _
    %v43 = vld [vmem:[%s0] sm:$0xff]
    %v44 = vld [vmem:[%s1] sm:$0xff]
    %46 = vset.pattern.permute.xlu0 0
    %47 = vperm.xlu0 %46, %v43
    %v48 = vpop.permute.xlu0 %47
    %50 = vset.pattern.permute.xlu0 1
    %51 = vperm.xlu0 %50, %v43
    %v52 = vpop.permute.xlu0 %51
    %54 = vset.pattern.permute.xlu0 2
    %55 = vperm.xlu0 %54, %v43
    %v56 = vpop.permute.xlu0 %55
    %58 = vset.pattern.permute.xlu0 3
    %59 = vperm.xlu0 %58, %v43
    %v60 = vpop.permute.xlu0 %59
    %v63 = vperm.slane %v44, 0
    %v64 = vperm.slane %v44, 4
    %v67 = vperm.slane %v63, 0
    %v68 = vperm.slane %v64, 0
    %v69 = vperm.slane %v44, 1
    %v70 = vperm.slane %v44, 5
    %v73 = vperm.slane %v69, 1
    %v74 = vperm.slane %v70, 1
    %v75 = vperm.slane %v44, 2
    %v76 = vperm.slane %v44, 6
    %v79 = vperm.slane %v75, 2
    %v80 = vperm.slane %v76, 2
    %v81 = vperm.slane %v44, 3
    %v82 = vperm.slane %v44, 7
    %v85 = vperm.slane %v81, 3
    %v86 = vperm.slane %v82, 3
    %v87 = vld [vmem:[%s2] sm:$0x3]
    %v89 = vperm.slane %v87, 0
    %v90 = vperm.slane %v87, 1
    %v93 = vmul.f32 %v48, %v67
    %v94 = vmul.f32 %v48, %v68
    %v95 = vadd.f32 %v89, %v93
    %v96 = vadd.f32 %v90, %v94
    %v97 = vmul.f32 %v52, %v73
    %v98 = vmul.f32 %v52, %v74
    %v99 = vadd.f32 %v95, %v97
    %v100 = vadd.f32 %v96, %v98
    %v101 = vmul.f32 %v56, %v79
    %v102 = vmul.f32 %v56, %v80
    %v103 = vadd.f32 %v99, %v101
    %v104 = vadd.f32 %v100, %v102
    %v105 = vmul.f32 %v60, %v85
    %v106 = vmul.f32 %v60, %v86
    %v107 = vadd.f32 %v103, %v105
    %v108 = vadd.f32 %v104, %v106
    %v109 = vmax.f32 %v107, 0.0
    %v110 = vmax.f32 %v108, 0.0
    %v111 = vpack.c.bf16 %v109, %v109
    %v112 = vpack.c.bf16 %v110, %v110
    %v113 = vld [vmem:[#allocation2] sm:$0xff]
    %v114 = vld [vmem:[#allocation2 + $0x8] sm:$0xff]
    %v115 = vld [vmem:[#allocation2 + $0x10] sm:$0xff]
    %v116 = vld [vmem:[#allocation2 + $0x18] sm:$0xff]
    %v117 = vld [vmem:[#allocation2 + $0x20] sm:$0xff]
    %v118 = vld [vmem:[#allocation2 + $0x28] sm:$0xff]
    %v119 = vld [vmem:[#allocation2 + $0x30] sm:$0xff]
    %v120 = vld [vmem:[#allocation2 + $0x38] sm:$0xff]
    %v121 = vld [vmem:[#allocation2 + $0x40] sm:$0xff]
    %v122 = vld [vmem:[#allocation2 + $0x48] sm:$0xff]
    %v123 = vld [vmem:[#allocation2 + $0x50] sm:$0xff]
    %v124 = vld [vmem:[#allocation2 + $0x58] sm:$0xff]
    %v125 = vld [vmem:[#allocation2 + $0x60] sm:$0xff]
    %v126 = vld [vmem:[#allocation2 + $0x68] sm:$0xff]
    %v127 = vld [vmem:[#allocation2 + $0x70] sm:$0xff]
    %v128 = vld [vmem:[#allocation2 + $0x78] sm:$0xff]
    %v129 = vld [vmem:[#allocation2 + $0x80] sm:$0xff]
    %v130 = vld [vmem:[#allocation2 + $0x88] sm:$0xff]
    %v131 = vld [vmem:[#allocation2 + $0x90] sm:$0xff]
    %v132 = vld [vmem:[#allocation2 + $0x98] sm:$0xff]
    %v133 = vld [vmem:[#allocation2 + $0xa0] sm:$0xff]
    %v134 = vld [vmem:[#allocation2 + $0xa8] sm:$0xff]
    %v135 = vld [vmem:[#allocation2 + $0xb0] sm:$0xff]
    %v136 = vld [vmem:[#allocation2 + $0xb8] sm:$0xff]
    %v137 = vld [vmem:[#allocation2 + $0xc0] sm:$0xff]
    %v138 = vld [vmem:[#allocation2 + $0xc8] sm:$0xff]
    %v139 = vld [vmem:[#allocation2 + $0xd0] sm:$0xff]
    %v140 = vld [vmem:[#allocation2 + $0xd8] sm:$0xff]
    %v141 = vld [vmem:[#allocation2 + $0xe0] sm:$0xff]
    %v142 = vld [vmem:[#allocation2 + $0xe8] sm:$0xff]
    %v143 = vld [vmem:[#allocation2 + $0xf0] sm:$0xff]
    %v144 = vld [vmem:[#allocation2 + $0xf8] sm:$0xff]
    %v145 = vld [vmem:[%s4] sm:$0x3]
    %v147 = vperm.slane %v145, 0
    %v148 = vperm.slane %v145, 1
    %v183 = vunpack.c.l.b16 %v113
    %v184 = vunpack.c.h.b16 %v113
    %v185 = vunpack.c.l.b16 %v114
    %v186 = vunpack.c.h.b16 %v114
    %v187 = vunpack.c.l.b16 %v115
    %v188 = vunpack.c.h.b16 %v115
    %v189 = vunpack.c.l.b16 %v116
    %v190 = vunpack.c.h.b16 %v116
    %v191 = vunpack.c.l.b16 %v117
    %v192 = vunpack.c.h.b16 %v117
    %v193 = vunpack.c.l.b16 %v118
    %v194 = vunpack.c.h.b16 %v118
    %v195 = vunpack.c.l.b16 %v119
    %v196 = vunpack.c.h.b16 %v119
    %v197 = vunpack.c.l.b16 %v120
    %v198 = vunpack.c.h.b16 %v120
    %v199 = vunpack.c.l.b16 %v121
    %v200 = vunpack.c.h.b16 %v121
    %v201 = vunpack.c.l.b16 %v122
    %v202 = vunpack.c.h.b16 %v122
    %v203 = vunpack.c.l.b16 %v123
    %v204 = vunpack.c.h.b16 %v123
    %v205 = vunpack.c.l.b16 %v124
    %v206 = vunpack.c.h.b16 %v124
    %v207 = vunpack.c.l.b16 %v125
    %v208 = vunpack.c.h.b16 %v125
    %v209 = vunpack.c.l.b16 %v126
    %v210 = vunpack.c.h.b16 %v126
    %v211 = vunpack.c.l.b16 %v127
    %v212 = vunpack.c.h.b16 %v127
    %v213 = vunpack.c.l.b16 %v128
    %v214 = vunpack.c.h.b16 %v128
    %v215 = vunpack.c.l.b16 %v129
    %v216 = vunpack.c.h.b16 %v129
    %v217 = vunpack.c.l.b16 %v130
    %v218 = vunpack.c.h.b16 %v130
    %v219 = vunpack.c.l.b16 %v131
    %v220 = vunpack.c.h.b16 %v131
    %v221 = vunpack.c.l.b16 %v132
    %v222 = vunpack.c.h.b16 %v132
    %v223 = vunpack.c.l.b16 %v133
    %v224 = vunpack.c.h.b16 %v133
    %v225 = vunpack.c.l.b16 %v134
    %v226 = vunpack.c.h.b16 %v134
    %v227 = vunpack.c.l.b16 %v135
    %v228 = vunpack.c.h.b16 %v135
    %v229 = vunpack.c.l.b16 %v136
    %v230 = vunpack.c.h.b16 %v136
    %v231 = vunpack.c.l.b16 %v137
    %v232 = vunpack.c.h.b16 %v137
    %v233 = vunpack.c.l.b16 %v138
    %v234 = vunpack.c.h.b16 %v138
    %v235 = vunpack.c.l.b16 %v139
    %v236 = vunpack.c.h.b16 %v139
    %v237 = vunpack.c.l.b16 %v140
    %v238 = vunpack.c.h.b16 %v140
    %v239 = vunpack.c.l.b16 %v141
    %v240 = vunpack.c.h.b16 %v141
    %v241 = vunpack.c.l.b16 %v142
    %v242 = vunpack.c.h.b16 %v142
    %v243 = vunpack.c.l.b16 %v143
    %v244 = vunpack.c.h.b16 %v143
    %v245 = vunpack.c.l.b16 %v144
    %v246 = vunpack.c.h.b16 %v144
    %v247 = vpack.c.b16 %v185, %v183
    %v248 = vpack.c.b16 %v186, %v184
    %v249 = vpack.c.b16 %v189, %v187
    %v250 = vpack.c.b16 %v190, %v188
    %v251 = vpack.c.b16 %v193, %v191
    %v252 = vpack.c.b16 %v194, %v192
    %v253 = vpack.c.b16 %v197, %v195
    %v254 = vpack.c.b16 %v198, %v196
    %v255 = vpack.c.b16 %v201, %v199
    %v256 = vpack.c.b16 %v202, %v200
    %v257 = vpack.c.b16 %v205, %v203
    %v258 = vpack.c.b16 %v206, %v204
    %v259 = vpack.c.b16 %v209, %v207
    %v260 = vpack.c.b16 %v210, %v208
    %v261 = vpack.c.b16 %v213, %v211
    %v262 = vpack.c.b16 %v214, %v212
    %v263 = vpack.c.b16 %v217, %v215
    %v264 = vpack.c.b16 %v218, %v216
    %v265 = vpack.c.b16 %v221, %v219
    %v266 = vpack.c.b16 %v222, %v220
    %v267 = vpack.c.b16 %v225, %v223
    %v268 = vpack.c.b16 %v226, %v224
    %v269 = vpack.c.b16 %v229, %v227
    %v270 = vpack.c.b16 %v230, %v228
    %v271 = vpack.c.b16 %v233, %v231
    %v272 = vpack.c.b16 %v234, %v232
    %v273 = vpack.c.b16 %v237, %v235
    %v274 = vpack.c.b16 %v238, %v236
    %v275 = vpack.c.b16 %v241, %v239
    %v276 = vpack.c.b16 %v242, %v240
    %v277 = vpack.c.b16 %v245, %v243
    %v278 = vpack.c.b16 %v246, %v244
    %311 = vmatpush.bf16.msra.mxu0 %v261
    %312 = vmatpush.bf16.msra.mxu0 %v259
    %313 = vmatpush.bf16.msra.mxu0 %v257
    %314 = vmatpush.bf16.msra.mxu0 %v255
    %315 = vmatpush.bf16.msra.mxu0 %v253
    %316 = vmatpush.bf16.msra.mxu0 %v251
    %317 = vmatpush.bf16.msra.mxu0 %v249
    %318 = vmatpush.bf16.msra.mxu0 %v247
    %319 = vmatmul.bf16.gmra.mxu0 %v111
    %v320 = vpop.f32.mrf.mxu0
    %v321 = vadd.f32 %v147, %v320
    %v322 = vpop.f32.mrf.mxu0
    %323 = vdwg.mxu0
    %324 = vmatpush.bf16.msra.mxu0 %v277
    %325 = vmatpush.bf16.msra.mxu0 %v275
    %326 = vmatpush.bf16.msra.mxu0 %v273
    %327 = vmatpush.bf16.msra.mxu0 %v271
    %328 = vmatpush.bf16.msra.mxu0 %v269
    %329 = vmatpush.bf16.msra.mxu0 %v267
    %330 = vmatpush.bf16.msra.mxu0 %v265
    %331 = vmatpush.bf16.msra.mxu0 %v263
    %332 = vmatmul.bf16.gmra.mxu0 %v112
    %v333 = vpop.f32.mrf.mxu0
    %v334 = vadd.f32 %v321, %v333
    %v335 = vpop.f32.mrf.mxu0
    %336 = vdwg.mxu0
    %337 = vmatpush.bf16.msra.mxu0 %v262
    %338 = vmatpush.bf16.msra.mxu0 %v260
    %339 = vmatpush.bf16.msra.mxu0 %v258
    %340 = vmatpush.bf16.msra.mxu0 %v256
    %341 = vmatpush.bf16.msra.mxu0 %v254
    %342 = vmatpush.bf16.msra.mxu0 %v252
    %343 = vmatpush.bf16.msra.mxu0 %v250
    %344 = vmatpush.bf16.msra.mxu0 %v248
    %345 = vmatmul.bf16.gmra.mxu0 %v111
    %v346 = vpop.f32.mrf.mxu0
    %v347 = vadd.f32 %v148, %v346
    %v348 = vpop.f32.mrf.mxu0
    %349 = vdwg.mxu0
    %350 = vmatpush.bf16.msra.mxu0 %v278
    %351 = vmatpush.bf16.msra.mxu0 %v276
    %352 = vmatpush.bf16.msra.mxu0 %v274
    %353 = vmatpush.bf16.msra.mxu0 %v272
    %354 = vmatpush.bf16.msra.mxu0 %v270
    %355 = vmatpush.bf16.msra.mxu0 %v268
    %356 = vmatpush.bf16.msra.mxu0 %v266
    %357 = vmatpush.bf16.msra.mxu0 %v264
    %358 = vmatmul.bf16.gmra.mxu0 %v112
    %v359 = vpop.f32.mrf.mxu0
    %v360 = vadd.f32 %v347, %v359
    %v361 = vpop.f32.mrf.mxu0
    %362 = vdwg.mxu0
    %v363 = vmax.f32 %v334, 0.0
    %v364 = vmax.f32 %v360, 0.0
    %v365 = vpack.c.bf16 %v363, %v363
    %v366 = vpack.c.bf16 %v364, %v364
    %v367 = vld [vmem:[%s5] sm:$0xf]
    %v368 = vld [vmem:[%s5 + $0x4] sm:$0xf]
    %v369 = vld [vmem:[%s5 + $0x8] sm:$0xf]
    %v370 = vld [vmem:[%s5 + $0xc] sm:$0xf]
    %v371 = vld [vmem:[%s5 + $0x10] sm:$0xf]
    %v372 = vld [vmem:[%s5 + $0x14] sm:$0xf]
    %v373 = vld [vmem:[%s5 + $0x18] sm:$0xf]
    %v374 = vld [vmem:[%s5 + $0x1c] sm:$0xf]
    %v375 = vld [vmem:[%s5 + $0x20] sm:$0xf]
    %v376 = vld [vmem:[%s5 + $0x24] sm:$0xf]
    %v377 = vld [vmem:[%s5 + $0x28] sm:$0xf]
    %v378 = vld [vmem:[%s5 + $0x2c] sm:$0xf]
    %v379 = vld [vmem:[%s5 + $0x30] sm:$0xf]
    %v380 = vld [vmem:[%s5 + $0x34] sm:$0xf]
    %v381 = vld [vmem:[%s5 + $0x38] sm:$0xf]
    %v382 = vld [vmem:[%s5 + $0x3c] sm:$0xf]
    %v383 = vld [vmem:[%s5 + $0x40] sm:$0xf]
    %v384 = vld [vmem:[%s5 + $0x44] sm:$0xf]
    %v385 = vld [vmem:[%s5 + $0x48] sm:$0xf]
    %v386 = vld [vmem:[%s5 + $0x4c] sm:$0xf]
    %v387 = vld [vmem:[%s5 + $0x50] sm:$0xf]
    %v388 = vld [vmem:[%s5 + $0x54] sm:$0xf]
    %v389 = vld [vmem:[%s5 + $0x58] sm:$0xf]
    %v390 = vld [vmem:[%s5 + $0x5c] sm:$0xf]
    %v391 = vld [vmem:[%s5 + $0x60] sm:$0xf]
    %v392 = vld [vmem:[%s5 + $0x64] sm:$0xf]
    %v393 = vld [vmem:[%s5 + $0x68] sm:$0xf]
    %v394 = vld [vmem:[%s5 + $0x6c] sm:$0xf]
    %v395 = vld [vmem:[%s5 + $0x70] sm:$0xf]
    %v396 = vld [vmem:[%s5 + $0x74] sm:$0xf]
    %v397 = vld [vmem:[%s5 + $0x78] sm:$0xf]
    %v398 = vld [vmem:[%s5 + $0x7c] sm:$0xf]
    %v399 = vld [vmem:[%s6] sm:$0x1]
    %v401 = vperm.slane %v399, 0
    %v435 = vunpack.c.l.b16 %v367
    %v436 = vunpack.c.l.b16 %v368
    %v437 = vunpack.c.l.b16 %v369
    %v438 = vunpack.c.l.b16 %v370
    %v439 = vunpack.c.l.b16 %v371
    %v440 = vunpack.c.l.b16 %v372
    %v441 = vunpack.c.l.b16 %v373
    %v442 = vunpack.c.l.b16 %v374
    %v443 = vunpack.c.l.b16 %v375
    %v444 = vunpack.c.l.b16 %v376
    %v445 = vunpack.c.l.b16 %v377
    %v446 = vunpack.c.l.b16 %v378
    %v447 = vunpack.c.l.b16 %v379
    %v448 = vunpack.c.l.b16 %v380
    %v449 = vunpack.c.l.b16 %v381
    %v450 = vunpack.c.l.b16 %v382
    %v451 = vunpack.c.l.b16 %v383
    %v452 = vunpack.c.l.b16 %v384
    %v453 = vunpack.c.l.b16 %v385
    %v454 = vunpack.c.l.b16 %v386
    %v455 = vunpack.c.l.b16 %v387
    %v456 = vunpack.c.l.b16 %v388
    %v457 = vunpack.c.l.b16 %v389
    %v458 = vunpack.c.l.b16 %v390
    %v459 = vunpack.c.l.b16 %v391
    %v460 = vunpack.c.l.b16 %v392
    %v461 = vunpack.c.l.b16 %v393
    %v462 = vunpack.c.l.b16 %v394
    %v463 = vunpack.c.l.b16 %v395
    %v464 = vunpack.c.l.b16 %v396
    %v465 = vunpack.c.l.b16 %v397
    %v466 = vunpack.c.l.b16 %v398
    %v467 = vpack.c.b16 %v436, %v435
    %v468 = vpack.c.b16 %v438, %v437
    %v469 = vpack.c.b16 %v440, %v439
    %v470 = vpack.c.b16 %v442, %v441
    %v471 = vpack.c.b16 %v444, %v443
    %v472 = vpack.c.b16 %v446, %v445
    %v473 = vpack.c.b16 %v448, %v447
    %v474 = vpack.c.b16 %v450, %v449
    %v475 = vpack.c.b16 %v452, %v451
    %v476 = vpack.c.b16 %v454, %v453
    %v477 = vpack.c.b16 %v456, %v455
    %v478 = vpack.c.b16 %v458, %v457
    %v479 = vpack.c.b16 %v460, %v459
    %v480 = vpack.c.b16 %v462, %v461
    %v481 = vpack.c.b16 %v464, %v463
    %v482 = vpack.c.b16 %v466, %v465
    %499 = vmatpush.bf16.msra.mxu0 %v474
    %500 = vmatpush.bf16.msra.mxu0 %v473
    %501 = vmatpush.bf16.msra.mxu0 %v472
    %502 = vmatpush.bf16.msra.mxu0 %v471
    %503 = vmatpush.bf16.msra.mxu0 %v470
    %504 = vmatpush.bf16.msra.mxu0 %v469
    %505 = vmatpush.bf16.msra.mxu0 %v468
    %506 = vmatpush.bf16.msra.mxu0 %v467
    %507 = vmatmul.bf16.gmra.mxu0 %v365
    %v508 = vpop.f32.mrf.mxu0
    %v509 = vadd.f32 %v401, %v508
    %v510 = vpop.f32.mrf.mxu0
    %511 = vdwg.mxu0
    %512 = vmatpush.bf16.msra.mxu0 %v482
    %513 = vmatpush.bf16.msra.mxu0 %v481
    %514 = vmatpush.bf16.msra.mxu0 %v480
    %515 = vmatpush.bf16.msra.mxu0 %v479
    %516 = vmatpush.bf16.msra.mxu0 %v478
    %517 = vmatpush.bf16.msra.mxu0 %v477
    %518 = vmatpush.bf16.msra.mxu0 %v476
    %519 = vmatpush.bf16.msra.mxu0 %v475
    %520 = vmatmul.bf16.gmra.mxu0 %v366
    %v521 = vpop.f32.mrf.mxu0
    %v522 = vadd.f32 %v509, %v521
    %v523 = vpop.f32.mrf.mxu0
    %524 = vdwg.mxu0
    %vm525 = vcmask 261120
    %526 = vst.msk [vmem:[#allocation5] sm:$0xff] %vm525, %v522
    // Predicated region
    $region34: #{cartpole_inv_encoder.1} parent=1 // pred_check
      _
    $region35: #{cartpole_inv_encoder.1} parent=1 // pred_check_branch
      %528 = sbr.rel (0) target = $region37
    $region36: #{cartpole_inv_encoder.1} parent=1 // pred_region
      %530 = vsyncadd [#allocation4], 0
      %s532 = sshll.u32 [#allocation5], 4
      %s533 = int_to_ptr.vmem [resolvable:$true] %s532
      %s534 = sshll.u32 %s7, 4
      %s535 = int_to_ptr.hbm [resolvable:$true] %s534
      %537 = dma.vmem_to_hbm [thread:$0]  %s533, 128, %s535, [#allocation4]
    $region37: #{cartpole_inv_encoder.1} parent=1 // pred_fallthru
      _
    // Predicated region
    $region38: #{cartpole_inv_encoder.1} parent=1 // pred_check
      _
    $region39: #{cartpole_inv_encoder.1} parent=1 // pred_check_branch
      %539 = sbr.rel (0) target = $region41
    $region40: #{cartpole_inv_encoder.1} parent=1 // pred_region
      %541 = dma.done [#allocation4], 128
    $region41: #{cartpole_inv_encoder.1} parent=1 // pred_fallthru
      _
    %542 = vsyncpa [#allocation3], 1
    %543 = vsyncpa [#allocation4], 1

</llo_original>
